<compile_context>
chip_gen: v7x
topology: tpu7x:2x2x1
jax: 0.10.0
libtpu: 0.0.40
codegen_flags: <defaults>
</compile_context>

<pallas_src>
import math

import jax
import jax.numpy as jnp
from jax.experimental import pallas as pl
from jax.experimental.pallas import tpu as pltpu

_LANE = 128
_COL_CANDIDATES = (8192, 4096, 2048, 1024, 512, 256, 128)


def _sigmoid_kernel(x_ref, o_ref):
    # Elementwise sigmoid on the current VMEM tile.
    # sigmoid(x) == 0.5 * (tanh(x / 2) + 1): single trip through the EUP.
    x = x_ref[...]
    o_ref[...] = (0.5 * (jnp.tanh(0.5 * x) + 1.0)).astype(o_ref.dtype)


def _min_sublane(dtype) -> int:
    itemsize = jnp.dtype(dtype).itemsize
    if itemsize >= 4:
        return 8
    if itemsize == 2:
        return 16
    return 32


def image_dofs_forward(dofs: jax.Array,
                       *,
                       target_block_bytes: int = 2 * 1024 * 1024,
                       min_kernel_bytes: int = 1 << 20) -> jax.Array:
    """Compute sigmoid(dofs) (same semantics as ImageDOFs.forward()).

    dofs: (n_batch, n_channels, H, W) parameter (NCHW, like the PyTorch module).
    Returns an array of the same shape/dtype equal to torch.sigmoid(dofs).
    """
    shape = dofs.shape
    dtype = dofs.dtype
    total = math.prod(shape) if shape else 1
    itemsize = jnp.dtype(dtype).itemsize

    # Fast path: for tiny parameters the kernel launch + layout glue dominates.
    if total * itemsize < min_kernel_bytes:
        return jax.nn.sigmoid(dofs)

    min_sub = _min_sublane(dtype)

    # Lane-dense 2D factorization (rows, cols), cols a wide multiple of 128 that
    # divides the (128-padded) element count.  Prefer rows >= min_sub so vregs
    # are fully populated.
    padded_total = pl.cdiv(total, _LANE) * _LANE
    cols = _LANE
    for c in _COL_CANDIDATES:
        if padded_total % c == 0 and padded_total // c >= min_sub:
            cols = c
            break
    rows = padded_total // cols

    flat = dofs.reshape(-1)
    if padded_total != total:
        # Rare for image-shaped parameters; padded tail is computed then dropped.
        flat = jnp.pad(flat, (0, padded_total - total))
    x2d = flat.reshape(rows, cols)

    # Row-tile sizing: ~target_block_bytes per block, rounded to the dtype's
    # minimum sublane tile, and >= 2 grid steps so both v7x TensorCores are fed.
    if rows <= min_sub:
        row_block = rows  # full second-to-last dim (allowed even if < min tile)
    else:
        n_blocks = max(1, pl.cdiv(padded_total * itemsize, target_block_bytes))
        if rows >= 2 * min_sub:
            n_blocks = max(n_blocks, 2)
        row_block = pl.cdiv(pl.cdiv(rows, n_blocks), min_sub) * min_sub
        row_block = min(row_block, (rows // min_sub) * min_sub)
    grid = (pl.cdiv(rows, row_block),)

    out2d = pl.pallas_call(
        _sigmoid_kernel,
        out_shape=jax.ShapeDtypeStruct((rows, cols), dtype),
        grid=grid,
        in_specs=[pl.BlockSpec((row_block, cols), lambda i: (i, 0))],
        out_specs=pl.BlockSpec((row_block, cols), lambda i: (i, 0)),
        compiler_params=pltpu.CompilerParams(
            dimension_semantics=("parallel",)),
    )(x2d)

    out = out2d.reshape(-1)
    if padded_total != total:
        out = out[:total]
    return out.reshape(shape)


if __name__ == "__main__":
    key = jax.random.PRNGKey(0)
    k1, k2 = jax.random.split(key)

    # Small NCHW parameter (matches module __init__: dofs = 0.1 * randn(...)).
    n_batch, n_channels, H, W = 2, 4, 16, 16
    dofs_small = 0.1 * jax.random.normal(
        k1, (n_batch, n_channels, H, W), dtype=jnp.float32)

    # Force the Pallas kernel path even for this tiny test parameter.
    out_small = jax.block_until_ready(
        image_dofs_forward(dofs_small, min_kernel_bytes=0))
    ref_small = jax.nn.sigmoid(dofs_small)
    assert out_small.shape == dofs_small.shape
    assert out_small.dtype == dofs_small.dtype
    assert jnp.max(jnp.abs(out_small - ref_small)) < 1e-5

    # Module-default-shaped parameter (1, 3, 224, 224): exercises the wide-lane
    # factorization (cols=1024) and the multi-block "parallel" grid.
    dofs_img = 0.1 * jax.random.normal(k2, (1, 3, 224, 224), dtype=jnp.float32)
    out_img = jax.block_until_ready(
        image_dofs_forward(dofs_img, min_kernel_bytes=0))
    ref_img = jax.nn.sigmoid(dofs_img)
    assert out_img.shape == dofs_img.shape
    assert jnp.max(jnp.abs(out_img - ref_img)) < 1e-5

    # Tiny-tensor fast path (plain XLA) also stays correct.
    out_fast = jax.block_until_ready(image_dofs_forward(dofs_small))
    assert jnp.max(jnp.abs(out_fast - ref_small)) < 1e-5

    print("KERNEL_OK")
</pallas_src>

<mosaic_0001>
module attributes {stable_mosaic.version = 11 : i64} {
  func.func @_sigmoid_kernel(%arg0: i32, %arg1: memref<8x256xf32, #tpu.memory_space<vmem>>, %arg2: memref<8x256xf32, #tpu.memory_space<vmem>>) attributes {dimension_semantics = [#tpu.dimension_semantics<parallel>], iteration_bounds = array<i64: 1>, scalar_prefetch = 0 : i64, scratch_operands = 0 : i64, tpu.core_type = #tpu.core_type<tc>, window_params = [{transform_indices = @transform_0, window_bounds = array<i64: 8, 256>}, {transform_indices = @transform_1, window_bounds = array<i64: 8, 256>}]} {
    %c0 = arith.constant 0 : index
    %c0_0 = arith.constant 0 : index
    %0 = vector.load %arg1[%c0, %c0_0] : memref<8x256xf32, #tpu.memory_space<vmem>>, vector<8x256xf32>
    %cst = arith.constant 5.000000e-01 : f32
    %1 = vector.broadcast %cst : f32 to vector<8x256xf32>
    %2 = arith.mulf %1, %0 : vector<8x256xf32>
    %3 = math.tanh %2 : vector<8x256xf32>
    %cst_1 = arith.constant 1.000000e+00 : f32
    %4 = vector.broadcast %cst_1 : f32 to vector<8x256xf32>
    %5 = arith.addf %3, %4 : vector<8x256xf32>
    %cst_2 = arith.constant 5.000000e-01 : f32
    %6 = vector.broadcast %cst_2 : f32 to vector<8x256xf32>
    %7 = arith.mulf %6, %5 : vector<8x256xf32>
    %c0_3 = arith.constant 0 : index
    %c0_4 = arith.constant 0 : index
    %8 = vector.load %arg2[%c0_3, %c0_4] : memref<8x256xf32, #tpu.memory_space<vmem>>, vector<8x256xf32>
    tpu.vector_store %arg2[%c0_3, %c0_4], %7 {strides = array<i32>} : memref<8x256xf32, #tpu.memory_space<vmem>>, vector<8x256xf32>,
    return
  }
  func.func @transform_0(%arg0: i32) -> (i32, i32) {
    %c0_i32 = arith.constant 0 : i32
    %c0_i32_0 = arith.constant 0 : i32
    return %arg0, %c0_i32 : i32, i32
  }
  func.func @transform_1(%arg0: i32) -> (i32, i32) {
    %c0_i32 = arith.constant 0 : i32
    %c0_i32_0 = arith.constant 0 : i32
    return %arg0, %c0_i32 : i32, i32
  }
}

</mosaic_0001>

<llo_original>
// kernel: tpu_custom_call.1
$region0: #{tpu_custom_call.1}
  #allocation0 [shape = 'u32[]', space=smem, size = 0x4, offset = 0x4, fixed_abs, tag = 'smem constant byte address 0x4 - core index']
  #allocation1 [shape = 'u32[144,128]{1,0:T(1,128)}', space=vmem, size = 0x12000, scoped, tag = 'internal scratch']
  %s0 = inlined_call_operand.hbm [shape: f32[8,256], index: 0, kind: input, shape index: {}]
  %s1 = inlined_call_operand.hbm [shape: f32[8,256], index: 1, kind: output, shape index: {}]
  %s2 = sld [smem:[#allocation0]]
  $region18: #{tpu_custom_call.1} parent=0
    _
  %s4 = ssub.s32 1, %s2
  %s5 = scalar_select 0, %s4, %s2
  $region1: #{tpu_custom_call.1} parent=0
    #allocation2 [shape = 'u8[8192]{0}', space=vmem, size = 0x2000, scoped, tag = 'input window, operand 0, single buffered']
    #allocation3 [shape = 's32[1]{0}', space=sflag, size = 0x4, scoped, tag = 'scoped memory for tpu_custom_call.1']
    #allocation4 [shape = 's32[1]{0}', space=sflag, size = 0x4, scoped, tag = 'scoped memory for tpu_custom_call.1']
    #allocation5 [shape = 'u8[8192]{0}', space=vmem, size = 0x2000, scoped, tag = 'output window, operand 0, single buffered']
    %6 = vsyncpa [#allocation3], 0
    %7 = vsyncpa [#allocation4], 0
    // Predicated region
    $region2: #{tpu_custom_call.1} parent=1 // pred_check
      _
    $region3: #{tpu_custom_call.1} parent=1 // pred_check_branch
      %9 = sbr.rel (0) target = $region5
    $region4: #{tpu_custom_call.1} parent=1 // pred_region
      %s11 = ssub.s32 256, 256
      %12 = vsyncadd [#allocation3], %s11
      %s14 = sshll.u32 [#allocation2], 4
      %s15 = int_to_ptr.vmem [resolvable:$true] %s14
      %17 = dma.hbm_to_vmem [thread:$0]  %s0, 256, %s15, [#allocation3]
    $region5: #{tpu_custom_call.1} parent=1 // pred_fallthru
      _
    // Predicated region
    $region6: #{tpu_custom_call.1} parent=1 // pred_check
      _
    $region7: #{tpu_custom_call.1} parent=1 // pred_check_branch
      %19 = sbr.rel (0) target = $region9
    $region8: #{tpu_custom_call.1} parent=1 // pred_region
      %20 = dma.done [#allocation3], 256
    $region9: #{tpu_custom_call.1} parent=1 // pred_fallthru
      _
    %v21 = vld [vmem:[#allocation2] sm:$0xff]
    %v22 = vld [vmem:[#allocation2 + $0x8] sm:$0xff]
    %v23 = vmul.f32 %v21, 0.5
    %v24 = vmul.f32 %v22, 0.5
    %v25 = vtanh.pop %v23
    %v26 = vtanh.pop %v24
    %v27 = vadd.f32 %v25, 1.0
    %v28 = vadd.f32 %v26, 1.0
    %v29 = vmul.f32 %v27, 0.5
    %v30 = vmul.f32 %v28, 0.5
    %31 = vst [vmem:[#allocation5] sm:$0xff] %v29
    %32 = vst [vmem:[#allocation5 + $0x8] sm:$0xff] %v30
    // Predicated region
    $region10: #{tpu_custom_call.1} parent=1 // pred_check
      _
    $region11: #{tpu_custom_call.1} parent=1 // pred_check_branch
      %34 = sbr.rel (0) target = $region13
    $region12: #{tpu_custom_call.1} parent=1 // pred_region
      %s36 = ssub.s32 256, 256
      %37 = vsyncadd [#allocation4], %s36
      %s39 = sshll.u32 [#allocation5], 4
      %s40 = int_to_ptr.vmem [resolvable:$true] %s39
      %42 = dma.vmem_to_hbm [thread:$0]  %s40, 256, %s1, [#allocation4]
    $region13: #{tpu_custom_call.1} parent=1 // pred_fallthru
      _
    // Predicated region
    $region14: #{tpu_custom_call.1} parent=1 // pred_check
      _
    $region15: #{tpu_custom_call.1} parent=1 // pred_check_branch
      %44 = sbr.rel (0) target = $region17
    $region16: #{tpu_custom_call.1} parent=1 // pred_region
      %45 = dma.done [#allocation4], 256
    $region17: #{tpu_custom_call.1} parent=1 // pred_fallthru
      _
    %46 = vsyncpa [#allocation3], 1
    %47 = vsyncpa [#allocation4], 1

</llo_original>
